<compile_context>
chip_gen: v5e
topology: v5e:2x2
jax: 0.10.0
libtpu: 0.0.40
codegen_flags: <defaults>
</compile_context>

<pallas_src>
import jax
import jax.numpy as jnp
from jax.experimental import pallas as pl
from jax.experimental.pallas import tpu as pltpu

_PIX = 28 * 28  # 784


def _hbm_copy_kernel(x_hbm_ref, o_hbm_ref, sem):
    # Single direct HBM -> HBM DMA: no VMEM staging, no vector load/store
    # traffic, no per-grid-step overhead.  Purely HBM-BW bound.
    cp = pltpu.make_async_copy(x_hbm_ref, o_hbm_ref, sem)
    cp.start()
    cp.wait()


def _pallas_materialized_copy(x2d):
    """Fresh buffer via a grid-less pallas_call doing one HBM->HBM DMA."""
    nbytes = x2d.size * x2d.dtype.itemsize
    return pl.pallas_call(
        _hbm_copy_kernel,
        out_shape=jax.ShapeDtypeStruct(x2d.shape, x2d.dtype),
        in_specs=[pl.BlockSpec(memory_space=pl.ANY)],
        out_specs=pl.BlockSpec(memory_space=pl.ANY),
        scratch_shapes=[pltpu.SemaphoreType.DMA],
        cost_estimate=pl.CostEstimate(
            flops=0, transcendentals=0, bytes_accessed=2 * nbytes),
    )(x2d)


def view_as_1x28x28(x, materialize=False):
    """Equivalent of `input.view(-1, 1, 28, 28)`.

    Default path is a metadata-only reshape (zero bytes moved), matching the
    cost of torch's `.view`.  Set materialize=True to force a fresh buffer via
    a single Pallas HBM->HBM DMA copy.
    """
    total = x.size
    assert total % _PIX == 0, "input size must be divisible by 28*28"
    n = total // _PIX

    if not materialize:
        # .view is a zero-cost metadata reshape.
        return x.reshape(-1, 1, 28, 28)

    # Flatten to a predictable 2-D slab (metadata-only for contiguous inputs),
    # copy it HBM->HBM, then present it as (-1, 1, 28, 28) (metadata-only).
    x2d = x.reshape(n, _PIX)
    out2d = _pallas_materialized_copy(x2d)
    return out2d.reshape(-1, 1, 28, 28)


if __name__ == "__main__":
    key = jax.random.PRNGKey(0)

    # Small example inputs consistent with the module (flattened MNIST images).
    x_a = jax.random.normal(key, (2, 784), dtype=jnp.float32)
    x_b = jax.random.normal(jax.random.fold_in(key, 1),
                            (16, 1, 28, 28), dtype=jnp.float32)

    # Primary (recommended) path: metadata-only reshape, zero data movement.
    y_a = jax.block_until_ready(view_as_1x28x28(x_a))
    assert y_a.shape == (2, 1, 28, 28) and y_a.dtype == x_a.dtype
    assert jnp.array_equal(y_a, x_a.reshape(-1, 1, 28, 28))

    # Pallas materializing-copy path (direct HBM->HBM DMA), 2-D input.
    y_a_copy = jax.block_until_ready(view_as_1x28x28(x_a, materialize=True))
    assert y_a_copy.shape == (2, 1, 28, 28) and y_a_copy.dtype == x_a.dtype
    assert jnp.array_equal(y_a_copy, x_a.reshape(-1, 1, 28, 28))

    # Pallas materializing-copy path, 4-D input.
    y_b_copy = jax.block_until_ready(view_as_1x28x28(x_b, materialize=True))
    assert y_b_copy.shape == (16, 1, 28, 28) and y_b_copy.dtype == x_b.dtype
    assert jnp.array_equal(y_b_copy, x_b.reshape(-1, 1, 28, 28))

    print("KERNEL_OK")
</pallas_src>

<mosaic_0001>
module attributes {stable_mosaic.version = 11 : i64} {
  func.func @_hbm_copy_kernel(%arg0: memref<2x784xf32, #tpu.memory_space<any>>, %arg1: memref<2x784xf32, #tpu.memory_space<any>>, %arg2: memref<!tpu.dma_semaphore, #tpu.memory_space<semaphore_mem>>) attributes {dimension_semantics = [], scalar_prefetch = 0 : i64, scratch_operands = 1 : i64, tpu.core_type = #tpu.core_type<tc>} {
    tpu.enqueue_dma source(%arg0 : memref<2x784xf32, #tpu.memory_space<any>>) target(%arg1 : memref<2x784xf32, #tpu.memory_space<any>>) target_semaphore(%arg2 : memref<!tpu.dma_semaphore, #tpu.memory_space<semaphore_mem>>)
    tpu.wait_dma2 semaphore(%arg2 : memref<!tpu.dma_semaphore, #tpu.memory_space<semaphore_mem>>) src(%arg0 : memref<2x784xf32, #tpu.memory_space<any>>) dst(%arg1 : memref<2x784xf32, #tpu.memory_space<any>>)
    return
  }
}

</mosaic_0001>

<llo_original>
// kernel: tpu_custom_call.1
$region0: #{tpu_custom_call.1}
  #allocation0 [shape = 'u32[]', space=smem, size = 0x4, offset = 0x4, fixed_abs, tag = 'smem constant byte address 0x4 - core index']
  #allocation1 [shape = 'u32[72,128]{1,0:T(1,128)}', space=vmem, size = 0x9000, scoped, tag = 'internal scratch']
  #allocation2 [shape = 's32[1]{0}', space=sflag, size = 0x4, scoped, tag = 'scratch operand']
  #allocation3 [shape = 's32[]', space=sflag, size = 0x4, offset = 0, fixed_abs, tag = 'sflag constant byte address 0x0 - dummy sync flag']
  #allocation4 [shape = 'u32[0]{0}', space=smem, size = 0, offset = 0, fixed_abs, tag = 'smem constant byte address 0x0 - null']
  %s0 = inlined_call_operand.hbm [shape: f32[2,784], index: 0, kind: input, shape index: {}]
  %s1 = inlined_call_operand.hbm [shape: f32[2,784], index: 1, kind: output, shape index: {}]
  %s2 = sld [smem:[#allocation0]]
  $region2: #{tpu_custom_call.1} parent=0
    _
  %s4 = ssub.s32 1, %s2
  %s5 = scalar_select 0, %s4, %s2
  %s7 = sshll.u32 1, 14
  %s8 = sxor.u32 4294967295, %s7
  %s10 = sshll.u32 %s0, 4
  %s11 = int_to_ptr.hbm [resolvable:$true] %s10
  %s12 = sshll.u32 %s1, 4
  %s13 = int_to_ptr.hbm [resolvable:$true] %s12
  %16 = dma.general %s11, 224, %s13, [#allocation2], [#allocation3], [#allocation4], 0, 0
  %s17 = smul.u32 2, 1
  %s18 = smul.u32 %s17, 7
  %s19 = sshll.u32 %s18, 4
  %20 = dma.done [#allocation2], %s19
  %21 = vsyncmov [#allocation2]
  %s22 = vpop.sfrf %21
  %p23 = scmp.eq.s32.totalorder %s22, 0
  %p24 = pneg %p23
  %26 = shalt.err (%p24)

</llo_original>
